<compile_context>
chip_gen: v5e
topology: v5e:2x2
jax: 0.10.0
libtpu: 0.0.40
codegen_flags: <defaults>
</compile_context>

<pallas_src>
import functools

import jax
import jax.numpy as jnp
from jax.experimental import pallas as pl
from jax.experimental.pallas import tpu as pltpu


def task_head_kernel(x_ref, mask_ref, invc_ref, w_ref, b_ref,
                     logits_ref, probs_ref, acc_ref, *, mul_native):
    k = pl.program_id(1)

    @pl.when(k == 0)
    def _init():
        acc_ref[...] = jnp.zeros_like(acc_ref)

    # Streamed masked-sum over the sequence axis (HBM-bound path).
    x = x_ref[...]                                   # (TB, TS, H)  x dtype
    m = mask_ref[...]                                # (TB, TS, 1)  x dtype
    if mul_native:
        # Native-dtype multiply (exact for a 0/1 mask); on v6e/v7x bf16 VALU
        # packs 2 elems/lane, keeping the stream HBM-bound rather than
        # VALU-bound.  NaN/Inf at masked positions propagate as in the
        # reference (0 * NaN = NaN).
        masked = (x * m).astype(jnp.float32)
    else:
        # v5e and older: no bf16 VALU -> upcast before the multiply.
        masked = x.astype(jnp.float32) * m.astype(jnp.float32)
    acc_ref[...] += jnp.sum(masked, axis=1)          # (TB, H) f32 accumulate
    # TODO(synk): on v7x the convert+add still costs ~2.5 VALU ops/elem; a
    # batched dot_general on the (idle) MXU would make it fully HBM-bound.

    @pl.when(k == pl.num_programs(1) - 1)
    def _finalize():
        inv = invc_ref[...][:, :, 0]                 # (TB, 1)
        pooled = acc_ref[...] * inv                  # masked mean (TB, H)
        logits = jnp.dot(pooled, w_ref[...],
                         preferred_element_type=jnp.float32) + b_ref[...]
        logits_ref[...] = logits[None]               # (1, TB, LP) lane-dense
        mx = jnp.max(logits, axis=-1, keepdims=True)
        e = jnp.exp(logits - mx)                     # padded labels: exp(-1e30)=0
        probs_ref[...] = (e / jnp.sum(e, axis=-1, keepdims=True))[None]


def _divisors(n):
    out, d = set(), 1
    while d * d <= n:
        if n % d == 0:
            out.add(d)
            out.add(n // d)
        d += 1
    return sorted(out)


def _tpu_generation():
    try:
        return jax.devices()[0].device_kind.lower()
    except Exception:
        return ""


def _choose_tiles(B, S, H, itemsize, budget):
    """Return (tb, ts, Sp).

    tb always divides B (batch is never padded).  Sp == S unless S has no
    divisor-friendly tile, in which case x is padded by < 8 rows per tile.
    """
    # ---- batch tile: divisor of B, prefer >=2 tiles (v7x megacore) ----------
    per_row8 = 8 * (H + 128) * itemsize              # ts=8 sliver, incl. mask
    bdivs = _divisors(B)
    fit = [d for d in bdivs if d * per_row8 <= budget] or [1]
    cap = [d for d in fit if d <= 64] or [min(fit)]
    multi = [d for d in cap if d < B and d <= 32 and (d >= 4 or B <= 8)]
    tb = max(multi) if multi else max(cap)

    # ---- seq tile: largest divisor of S (multiple of 8) that fits budget ----
    per_ts = tb * (H + 128) * itemsize
    max_ts = max(8, (budget // per_ts) // 8 * 8)
    if S <= max_ts:
        return tb, S, S                              # single full-seq tile
    sdivs = [d for d in _divisors(S) if d % 8 == 0 and d <= max_ts]
    ts_div = max(sdivs) if sdivs else 0
    n_min = pl.cdiv(S, max_ts)
    ts_pad = 8 * pl.cdiv(S, 8 * n_min)               # pad < 8 rows per tile
    if ts_div * 4 >= ts_pad:                         # divisor tile not too small
        return tb, ts_div, S                         # -> no x padding at all
    return tb, ts_pad, ts_pad * pl.cdiv(S, ts_pad)   # rare fallback: tiny pad


def task_head_forward(x, mask, w, b):
    """TaskHead (classification) forward: masked-mean pool + linear + softmax.

    Args:
      x:    (B, S, H) float32 or bfloat16 backbone-encoded text.
      mask: (B, S)    token mask (any float/int/bool dtype, values 0/1).
      w:    (H, L)    classifier weight.
      b:    (L,) or (1, L) classifier bias.
    Returns:
      dict with "logits" (B, L) and "probs" (B, L)  — TaskOutput.as_dict().
    """
    B, S, H = x.shape
    L = w.shape[-1]
    LP = 128 * pl.cdiv(L, 128)
    itemsize = x.dtype.itemsize

    kind = _tpu_generation()
    old_gen = any(g in kind for g in ("v2", "v3", "v4", "v5"))
    if old_gen:
        budget = 6 << 20                             # v5e: 16 MiB default scope
    elif "v7" in kind:
        budget = 8 << 20                             # v7x: 64 MiB physical VMEM
    else:
        budget = 12 << 20                            # v6e / unknown
    mul_native = not old_gen

    tb, ts, Sp = _choose_tiles(B, S, H, itemsize, budget)
    nb, ns = B // tb, Sp // ts

    # 1/count precomputed on the XLA side (keeps the streaming loop divide-free).
    mask_f = mask.astype(jnp.float32)
    invc = (1.0 / jnp.maximum(jnp.sum(mask_f, axis=1), 1.0)).reshape(B, 1, 1)

    # Mask streamed in x's dtype, shaped (B, S, 1): sequence lands on sublanes,
    # so the in-kernel broadcast against x is a free lane-broadcast.
    mask_x = mask.astype(x.dtype).reshape(B, S, 1)
    if Sp != S:
        # Rare fallback: S has no divisor (multiple of 8) inside the VMEM
        # budget.  Pad is < 8 rows per tile -> bounded zero streaming.
        x = jnp.pad(x, ((0, 0), (0, Sp - S), (0, 0)))
        mask_x = jnp.pad(mask_x, ((0, 0), (0, Sp - S), (0, 0)))

    # Labels padded to a lane-dense multiple of 128; padded bias = -1e30 so the
    # padded logits vanish in the softmax (outputs are sliced back to L).
    w_p = jnp.zeros((H, LP), jnp.float32).at[:, :L].set(w.astype(jnp.float32))
    b_p = jnp.full((1, LP), -1e30, jnp.float32).at[:, :L].set(
        jnp.reshape(b, (1, L)).astype(jnp.float32))

    # Explicit scoped-VMEM limit sized from the actual working set.
    x_tile = tb * ts * H * itemsize
    mask_tile = tb * ts * 128 * itemsize             # lane-padded VMEM footprint
    need = (2 * (x_tile + mask_tile)                 # double-buffered streams
            + 2 * (H * LP * 4 + LP * 4 + tb * 4)     # invariant operands
            + 4 * tb * LP * 4                        # two outputs, 2 buffers
            + tb * H * 4)                            # accumulator scratch
    vmem_limit = int(min(max(need * 5 // 4 + (2 << 20), 32 << 20), 56 << 20))

    cost = pl.CostEstimate(
        flops=int(2 * B * Sp * H + 2 * B * H * LP + 4 * B * LP),
        transcendentals=int(B * LP),
        bytes_accessed=int(B * Sp * (H + 1) * itemsize + B * 4
                           + H * LP * 4 + LP * 4 + 2 * B * LP * 4))

    kernel = functools.partial(task_head_kernel, mul_native=mul_native)

    logits3, probs3 = pl.pallas_call(
        kernel,
        out_shape=(
            jax.ShapeDtypeStruct((nb, tb, LP), jnp.float32),
            jax.ShapeDtypeStruct((nb, tb, LP), jnp.float32),
        ),
        grid=(nb, ns),
        in_specs=[
            pl.BlockSpec((tb, ts, H), lambda i, k: (i, k, 0)),   # x stream
            pl.BlockSpec((tb, ts, 1), lambda i, k: (i, k, 0)),   # mask stream
            pl.BlockSpec((tb, 1, 1), lambda i, k: (i, 0, 0)),    # 1/count
            pl.BlockSpec((H, LP), lambda i, k: (0, 0)),          # weight (resident)
            pl.BlockSpec((1, LP), lambda i, k: (0, 0)),          # bias (resident)
        ],
        out_specs=(
            pl.BlockSpec((1, tb, LP), lambda i, k: (i, 0, 0)),
            pl.BlockSpec((1, tb, LP), lambda i, k: (i, 0, 0)),
        ),
        scratch_shapes=[pltpu.VMEM((tb, H), jnp.float32)],
        compiler_params=pltpu.CompilerParams(
            dimension_semantics=("parallel", "arbitrary"),
            vmem_limit_bytes=vmem_limit),
        cost_estimate=cost,
    )(x, mask_x, invc, w_p, b_p)

    logits = logits3.reshape(B, LP)[:, :L]
    probs = probs3.reshape(B, LP)[:, :L]
    return {"logits": logits, "probs": probs}


def reference_forward(x, mask, w, b):
    xf = x.astype(jnp.float32)
    mf = mask.astype(jnp.float32)
    pooled = (xf * mf[:, :, None]).sum(axis=1) / jnp.maximum(
        mf.sum(axis=1, keepdims=True), 1.0)
    logits = pooled @ w + b.reshape(1, -1)
    probs = jax.nn.softmax(logits, axis=-1)
    return logits, probs


if __name__ == "__main__":
    B, S, H, L = 2, 8, 32, 5   # batch, seq, hidden, num_labels

    key = jax.random.PRNGKey(0)
    kx, kw, kb = jax.random.split(key, 3)

    # bf16 encoded text (halves the dominant HBM traffic of the stream)
    x = jax.random.normal(kx, (B, S, H), dtype=jnp.float32).astype(jnp.bfloat16)
    # deterministic mask: first row keeps 6 tokens, second keeps all 8
    mask = jnp.stack([
        jnp.array([1, 1, 1, 1, 1, 1, 0, 0], dtype=jnp.float32),
        jnp.ones((S,), dtype=jnp.float32),
    ])
    w = jax.random.normal(kw, (H, L), dtype=jnp.float32) * 0.05
    b = jax.random.normal(kb, (1, L), dtype=jnp.float32) * 0.01

    out = task_head_forward(x, mask, w, b)
    jax.block_until_ready(out)

    ref_logits, ref_probs = reference_forward(x, mask, w, b)
    assert jnp.allclose(out["logits"], ref_logits, atol=1e-4, rtol=1e-4)
    assert jnp.allclose(out["probs"], ref_probs, atol=1e-4, rtol=1e-4)

    print("KERNEL_OK")
</pallas_src>

<mosaic_0001>
module attributes {stable_mosaic.version = 11 : i64} {
  func.func @task_head_kernel(%arg0: i32, %arg1: i32, %arg2: memref<1x8x32xbf16, #tpu.memory_space<vmem>>, %arg3: memref<1x8x1xbf16, #tpu.memory_space<vmem>>, %arg4: memref<1x1x1xf32, #tpu.memory_space<vmem>>, %arg5: memref<32x128xf32, #tpu.memory_space<vmem>>, %arg6: memref<1x128xf32, #tpu.memory_space<vmem>>, %arg7: memref<1x1x128xf32, #tpu.memory_space<vmem>>, %arg8: memref<1x1x128xf32, #tpu.memory_space<vmem>>, %arg9: memref<1x32xf32, #tpu.memory_space<vmem>>) attributes {dimension_semantics = [#tpu.dimension_semantics<parallel>, #tpu.dimension_semantics<arbitrary>], iteration_bounds = array<i64: 2, 1>, scalar_prefetch = 0 : i64, scratch_operands = 1 : i64, tpu.core_type = #tpu.core_type<tc>, window_params = [{transform_indices = @transform_0, window_bounds = array<i64: 1, 8, 32>}, {transform_indices = @transform_1, window_bounds = array<i64: 1, 8, 1>}, {transform_indices = @transform_2, window_bounds = array<i64: 1, 1, 1>}, {pipeline_mode = #tpu.pipeline_mode<synchronous>, transform_indices = @transform_3, window_bounds = array<i64: 32, 128>}, {pipeline_mode = #tpu.pipeline_mode<synchronous>, transform_indices = @transform_4, window_bounds = array<i64: 1, 128>}, {transform_indices = @transform_5, window_bounds = array<i64: 1, 1, 128>}, {transform_indices = @transform_6, window_bounds = array<i64: 1, 1, 128>}]} {
    %c0_i32 = arith.constant 0 : i32
    %0 = arith.cmpi eq, %arg1, %c0_i32 : i32
    %1 = arith.extui %0 : i1 to i32
    %c0_i32_0 = arith.constant 0 : i32
    %2 = arith.cmpi ne, %1, %c0_i32_0 : i32
    scf.if %2 {
      %cst_12 = arith.constant 0.000000e+00 : f32
      %15 = vector.broadcast %cst_12 : f32 to vector<1x32xf32>
      %c0_13 = arith.constant 0 : index
      %c0_14 = arith.constant 0 : index
      %16 = vector.load %arg9[%c0_13, %c0_14] : memref<1x32xf32, #tpu.memory_space<vmem>>, vector<1x32xf32>
      tpu.vector_store %arg9[%c0_13, %c0_14], %15 {strides = array<i32>} : memref<1x32xf32, #tpu.memory_space<vmem>>, vector<1x32xf32>,
    } else {
    }
    %c0 = arith.constant 0 : index
    %c0_1 = arith.constant 0 : index
    %c0_2 = arith.constant 0 : index
    %3 = vector.load %arg2[%c0, %c0_1, %c0_2] : memref<1x8x32xbf16, #tpu.memory_space<vmem>>, vector<1x8x32xbf16>
    %c0_3 = arith.constant 0 : index
    %c0_4 = arith.constant 0 : index
    %c0_5 = arith.constant 0 : index
    %4 = vector.load %arg3[%c0_3, %c0_4, %c0_5] : memref<1x8x1xbf16, #tpu.memory_space<vmem>>, vector<1x8x1xbf16>
    %5 = vector.broadcast %4 : vector<1x8x1xbf16> to vector<1x8x32xbf16>
    %6 = arith.mulf %3, %5 : vector<1x8x32xbf16>
    %7 = arith.extf %6 : vector<1x8x32xbf16> to vector<1x8x32xf32>
    %c0_6 = arith.constant 0 : index
    %c0_7 = arith.constant 0 : index
    %8 = vector.load %arg9[%c0_6, %c0_7] : memref<1x32xf32, #tpu.memory_space<vmem>>, vector<1x32xf32>
    %cst = arith.constant dense<0.000000e+00> : vector<1x32xf32>
    %9 = vector.multi_reduction <add>, %7, %cst [1] : vector<1x8x32xf32> to vector<1x32xf32>
    %10 = arith.addf %8, %9 : vector<1x32xf32>
    %c0_8 = arith.constant 0 : index
    %c0_9 = arith.constant 0 : index
    %11 = vector.load %arg9[%c0_8, %c0_9] : memref<1x32xf32, #tpu.memory_space<vmem>>, vector<1x32xf32>
    tpu.vector_store %arg9[%c0_8, %c0_9], %10 {strides = array<i32>} : memref<1x32xf32, #tpu.memory_space<vmem>>, vector<1x32xf32>,
    %c0_i32_10 = arith.constant 0 : i32
    %12 = arith.cmpi eq, %arg1, %c0_i32_10 : i32
    %13 = arith.extui %12 : i1 to i32
    %c0_i32_11 = arith.constant 0 : i32
    %14 = arith.cmpi ne, %13, %c0_i32_11 : i32
    scf.if %14 {
      %c0_12 = arith.constant 0 : index
      %c0_13 = arith.constant 0 : index
      %c0_14 = arith.constant 0 : index
      %15 = vector.load %arg4[%c0_12, %c0_13, %c0_14] : memref<1x1x1xf32, #tpu.memory_space<vmem>>, vector<1x1x1xf32>
      %16 = vector.shape_cast %15 : vector<1x1x1xf32> to vector<1x1xf32>
      %c0_15 = arith.constant 0 : index
      %c0_16 = arith.constant 0 : index
      %17 = vector.load %arg9[%c0_15, %c0_16] : memref<1x32xf32, #tpu.memory_space<vmem>>, vector<1x32xf32>
      %18 = vector.broadcast %16 : vector<1x1xf32> to vector<1x32xf32>
      %19 = arith.mulf %17, %18 : vector<1x32xf32>
      %c0_17 = arith.constant 0 : index
      %c0_18 = arith.constant 0 : index
      %20 = vector.load %arg5[%c0_17, %c0_18] : memref<32x128xf32, #tpu.memory_space<vmem>>, vector<32x128xf32>
      %cst_19 = arith.constant dense<0.000000e+00> : vector<1x128xf32>
      %21 = tpu.matmul %19, %20, %cst_19 {dimension_numbers = #tpu.dot_dimension_numbers<[1], [0], [0], [1], [0, 0, 1, 1], [], []>} : vector<1x32xf32>, vector<32x128xf32>, vector<1x128xf32> -> vector<1x128xf32>
      %c0_20 = arith.constant 0 : index
      %c0_21 = arith.constant 0 : index
      %22 = vector.load %arg6[%c0_20, %c0_21] : memref<1x128xf32, #tpu.memory_space<vmem>>, vector<1x128xf32>
      %23 = arith.addf %21, %22 : vector<1x128xf32>
      %24 = vector.shape_cast %23 : vector<1x128xf32> to vector<1x1x128xf32>
      %c0_22 = arith.constant 0 : index
      %c0_23 = arith.constant 0 : index
      %c0_24 = arith.constant 0 : index
      %25 = vector.load %arg7[%c0_22, %c0_23, %c0_24] : memref<1x1x128xf32, #tpu.memory_space<vmem>>, vector<1x1x128xf32>
      tpu.vector_store %arg7[%c0_22, %c0_23, %c0_24], %24 {strides = array<i32>} : memref<1x1x128xf32, #tpu.memory_space<vmem>>, vector<1x1x128xf32>,
      %cst_25 = arith.constant dense<0xFF800000> : vector<1xf32>
      %26 = vector.multi_reduction <maximumf>, %23, %cst_25 [1] : vector<1x128xf32> to vector<1xf32>
      %27 = vector.shape_cast %26 : vector<1xf32> to vector<1x1xf32>
      %28 = vector.broadcast %27 : vector<1x1xf32> to vector<1x128xf32>
      %29 = arith.subf %23, %28 : vector<1x128xf32>
      %30 = math.exp %29 : vector<1x128xf32>
      %cst_26 = arith.constant dense<0.000000e+00> : vector<1xf32>
      %31 = vector.multi_reduction <add>, %30, %cst_26 [1] : vector<1x128xf32> to vector<1xf32>
      %32 = vector.shape_cast %31 : vector<1xf32> to vector<1x1xf32>
      %33 = vector.broadcast %32 : vector<1x1xf32> to vector<1x128xf32>
      %34 = arith.divf %30, %33 : vector<1x128xf32>
      %35 = vector.shape_cast %34 : vector<1x128xf32> to vector<1x1x128xf32>
      %c0_27 = arith.constant 0 : index
      %c0_28 = arith.constant 0 : index
      %c0_29 = arith.constant 0 : index
      %36 = vector.load %arg8[%c0_27, %c0_28, %c0_29] : memref<1x1x128xf32, #tpu.memory_space<vmem>>, vector<1x1x128xf32>
      tpu.vector_store %arg8[%c0_27, %c0_28, %c0_29], %35 {strides = array<i32>} : memref<1x1x128xf32, #tpu.memory_space<vmem>>, vector<1x1x128xf32>,
    } else {
    }
    return
  }
  func.func @transform_0(%arg0: i32, %arg1: i32) -> (i32, i32, i32) {
    %c0_i32 = arith.constant 0 : i32
    %c0_i32_0 = arith.constant 0 : i32
    return %arg0, %arg1, %c0_i32 : i32, i32, i32
  }
  func.func @transform_1(%arg0: i32, %arg1: i32) -> (i32, i32, i32) {
    %c0_i32 = arith.constant 0 : i32
    %c0_i32_0 = arith.constant 0 : i32
    return %arg0, %arg1, %c0_i32 : i32, i32, i32
  }
  func.func @transform_2(%arg0: i32, %arg1: i32) -> (i32, i32, i32) {
    %c0_i32 = arith.constant 0 : i32
    %c0_i32_0 = arith.constant 0 : i32
    %c0_i32_1 = arith.constant 0 : i32
    return %arg0, %c0_i32, %c0_i32_0 : i32, i32, i32
  }
  func.func @transform_3(%arg0: i32, %arg1: i32) -> (i32, i32) {
    %c0_i32 = arith.constant 0 : i32
    %c0_i32_0 = arith.constant 0 : i32
    %c0_i32_1 = arith.constant 0 : i32
    return %c0_i32, %c0_i32_0 : i32, i32
  }
  func.func @transform_4(%arg0: i32, %arg1: i32) -> (i32, i32) {
    %c0_i32 = arith.constant 0 : i32
    %c0_i32_0 = arith.constant 0 : i32
    %c0_i32_1 = arith.constant 0 : i32
    return %c0_i32, %c0_i32_0 : i32, i32
  }
  func.func @transform_5(%arg0: i32, %arg1: i32) -> (i32, i32, i32) {
    %c0_i32 = arith.constant 0 : i32
    %c0_i32_0 = arith.constant 0 : i32
    %c0_i32_1 = arith.constant 0 : i32
    return %arg0, %c0_i32, %c0_i32_0 : i32, i32, i32
  }
  func.func @transform_6(%arg0: i32, %arg1: i32) -> (i32, i32, i32) {
    %c0_i32 = arith.constant 0 : i32
    %c0_i32_0 = arith.constant 0 : i32
    %c0_i32_1 = arith.constant 0 : i32
    return %arg0, %c0_i32, %c0_i32_0 : i32, i32, i32
  }
}

</mosaic_0001>

<llo_original>
// kernel: tpu_custom_call.1
$region0: #{tpu_custom_call.1}
  #allocation0 [shape = 'u32[]', space=smem, size = 0x4, offset = 0x4, fixed_abs, tag = 'smem constant byte address 0x4 - core index']
  #allocation1 [shape = 'u32[72,128]{1,0:T(1,128)}', space=vmem, size = 0x9000, scoped, tag = 'internal scratch']
  #allocation2 [shape = 'f32[1,32]{1,0:T(1,128)}', space=vmem, size = 0x200, scoped, tag = 'scratch operand']
  %s0 = inlined_call_operand.vmem [shape: bf16[2,8,32], index: 0, kind: input, shape index: {}]
  %s1 = inlined_call_operand.vmem [shape: bf16[2,8,1], index: 1, kind: input, shape index: {}]
  %s2 = inlined_call_operand.vmem [shape: f32[2,1,1], index: 2, kind: input, shape index: {}]
  %s3 = inlined_call_operand.hbm [shape: f32[32,128], index: 3, kind: input, shape index: {}]
  %s4 = inlined_call_operand.vmem [shape: f32[1,128], index: 4, kind: input, shape index: {}]
  %s5 = inlined_call_operand.hbm [shape: f32[2,1,128], index: 5, kind: output, shape index: {0}]
  %s6 = inlined_call_operand.hbm [shape: f32[2,1,128], index: 6, kind: output, shape index: {1}]
  %7 = xla_tuple %s5, %s6
  %s8 = sld [smem:[#allocation0]]
  $region73: #{tpu_custom_call.1} parent=0
    _
  %s10 = ssub.s32 1, %s8
  %s11 = scalar_select 0, %s10, %s8
  $region1: #{tpu_custom_call.1} parent=0
    #allocation3 [shape = 'u8[16384]{0}', space=vmem, size = 0x4000, scoped, tag = 'input window, operand 3, single buffered']
    #allocation4 [shape = 's32[2]{0}', space=sflag, size = 0x8, scoped, tag = 'scoped memory for tpu_custom_call.1']
    #allocation5 [shape = 's32[2]{0}', space=sflag, size = 0x8, scoped, tag = 'scoped memory for tpu_custom_call.1']
    #allocation6 [shape = 'u8[1024]{0}', space=vmem, size = 0x400, scoped, tag = 'output window, operand 0']
    #allocation7 [shape = 'u8[1024]{0}', space=vmem, size = 0x400, scoped, tag = 'output window, operand 1']
    #allocation8 [shape = 's32[2]{0}', space=sflag, size = 0x8, scoped, tag = 'scoped memory for tpu_custom_call.1']
    %12 = vsyncpa [#allocation4], 0
    %13 = vsyncpa [#allocation5], 0
    %s14 = scalar_lea.sflag [#allocation5], 1
    %15 = vsyncpa %s14, 0
    %16 = vsyncpa [#allocation8], 0
    %s17 = scalar_lea.sflag [#allocation8], 1
    %18 = vsyncpa %s17, 0
    loop: start=0, step=1, limit=4
    $region2: #{tpu_custom_call.1} parent=1 // loop_pre_header
      _
    $region3: #{tpu_custom_call.1} parent=1 // loop_header
      %s20 = sphi 0, %s24
      %p21 = scmp.ge.s32.totalorder %s20, 4
      %s27 = sphi 0, %s39
      %s28 = sphi 0, %s35
      %s29 = sphi 0, %s27
      %s30 = sphi 0, %s28
      %s31 = sphi 0, %s29
      %s32 = sphi 0, %s30
      %s44 = sphi 0, %s46
      %s47 = sphi 0, %s44
      %s48 = sphi 0, %s47
      %s64 = sphi 0, %s48
      %s72 = sphi 0, %s74
      %s75 = sphi 0, %s72
      %s76 = sphi 0, %s75
      %s92 = sphi 0, %s76
      %s98 = sphi 0, %s100
      %s101 = sphi 0, %s98
      %s102 = sphi 0, %s101
      %s118 = sphi 0, %s102
      %s122 = sphi 0, %s122
      %s124 = sphi 0, %s122
      %s125 = sphi 0, %s124
      %s139 = sphi 0, %s125
      %s143 = sphi 0, %s143
      %s145 = sphi 0, %s143
      %s146 = sphi 0, %s145
      %s160 = sphi 0, %s146
      %s166 = sphi 0, %s168
      %s169 = sphi 0, %s166
      %s170 = sphi 0, %s169
      %s186 = sphi 0, %s170
      %s192 = sphi 0, %s194
      %s195 = sphi 0, %s192
      %s196 = sphi 0, %s195
      %s212 = sphi 0, %s196
    $region4: #{tpu_custom_call.1} parent=1 // loop_header_branch
      %23 = sbr.rel (%p21) target = $region8
    $region5: #{tpu_custom_call.1} parent=1 // loop_body
      %s25 = ssub.s32 %s20, 1
      %s26 = ssub.s32 %s20, 2
      %s33 = sadd.s32 1, %s28
      %p34 = scmp.ge.s32.totalorder %s33, 1
      %s35 = scalar_select %p34, 0, %s33
      %s36 = sadd.s32 1, %s27
      %s37 = scalar_select %p34, %s36, %s27
      %p38 = scmp.ge.s32.totalorder %s37, 2
      %s39 = scalar_select %p38, 0, %s37
      %s40 = ssub.s32 %s27, %s39
      %s41 = ssub.s32 %s28, %s35
      %s42 = sor.u32 %s40, %s41
      %p43 = scmp.eq.s32.totalorder %s42, 0
      %s45 = sadd.s32 %s44, 1
      %s46 = scalar_select %p43, %s44, %s45
      %p49 = pneg %p43
      %p50 = scmp.eq.s32.totalorder %s20, 1
      %p51 = por %p49, %p50
      %p52 = scmp.ne.s32.totalorder %s44, %s47
      %p53 = scmp.eq.s32.totalorder %s20, 0
      %p54 = por %p52, %p53
      %p55 = scmp.ne.s32.totalorder %s44, %s47
      %p56 = scmp.eq.s32.totalorder %s25, 1
      %p57 = por %p55, %p56
      %p58 = scmp.ne.s32.totalorder %s47, %s48
      %p59 = scmp.eq.s32.totalorder %s25, 0
      %p60 = por %p58, %p59
      %p61 = scmp.ne.s32.totalorder %s47, %s48
      %p62 = scmp.eq.s32.totalorder %s26, 1
      %p63 = por %p61, %p62
      %p65 = scmp.ne.s32.totalorder %s48, %s64
      %p66 = scmp.eq.s32.totalorder %s26, 0
      %p67 = por %p65, %p66
      %s68 = ssub.s32 %s27, %s39
      %s69 = ssub.s32 %s28, %s35
      %s70 = sor.u32 %s68, %s69
      %p71 = scmp.eq.s32.totalorder %s70, 0
      %s73 = sadd.s32 %s72, 1
      %s74 = scalar_select %p71, %s72, %s73
      %p77 = pneg %p71
      %p78 = scmp.eq.s32.totalorder %s20, 1
      %p79 = por %p77, %p78
      %p80 = scmp.ne.s32.totalorder %s72, %s75
      %p81 = scmp.eq.s32.totalorder %s20, 0
      %p82 = por %p80, %p81
      %p83 = scmp.ne.s32.totalorder %s72, %s75
      %p84 = scmp.eq.s32.totalorder %s25, 1
      %p85 = por %p83, %p84
      %p86 = scmp.ne.s32.totalorder %s75, %s76
      %p87 = scmp.eq.s32.totalorder %s25, 0
      %p88 = por %p86, %p87
      %p89 = scmp.ne.s32.totalorder %s75, %s76
      %p90 = scmp.eq.s32.totalorder %s26, 1
      %p91 = por %p89, %p90
      %p93 = scmp.ne.s32.totalorder %s76, %s92
      %p94 = scmp.eq.s32.totalorder %s26, 0
      %p95 = por %p93, %p94
      %s96 = ssub.s32 %s27, %s39
      %p97 = scmp.eq.s32.totalorder %s96, 0
      %s99 = sadd.s32 %s98, 1
      %s100 = scalar_select %p97, %s98, %s99
      %p103 = pneg %p97
      %p104 = scmp.eq.s32.totalorder %s20, 1
      %p105 = por %p103, %p104
      %p106 = scmp.ne.s32.totalorder %s98, %s101
      %p107 = scmp.eq.s32.totalorder %s20, 0
      %p108 = por %p106, %p107
      %p109 = scmp.ne.s32.totalorder %s98, %s101
      %p110 = scmp.eq.s32.totalorder %s25, 1
      %p111 = por %p109, %p110
      %p112 = scmp.ne.s32.totalorder %s101, %s102
      %p113 = scmp.eq.s32.totalorder %s25, 0
      %p114 = por %p112, %p113
      %p115 = scmp.ne.s32.totalorder %s101, %s102
      %p116 = scmp.eq.s32.totalorder %s26, 1
      %p117 = por %p115, %p116
      %p119 = scmp.ne.s32.totalorder %s102, %s118
      %p120 = scmp.eq.s32.totalorder %s26, 0
      %p121 = por %p119, %p120
      %s123 = sadd.s32 %s122, 1
      %p126 = scmp.eq.s32.totalorder %s20, 1
      %p127 = scmp.ne.s32.totalorder %s122, %s124
      %p128 = scmp.eq.s32.totalorder %s20, 0
      %p129 = por %p127, %p128
      %p130 = scmp.ne.s32.totalorder %s122, %s124
      %p131 = scmp.eq.s32.totalorder %s25, 1
      %p132 = por %p130, %p131
      %p133 = scmp.ne.s32.totalorder %s124, %s125
      %p134 = scmp.eq.s32.totalorder %s25, 0
      %p135 = por %p133, %p134
      %p136 = scmp.ne.s32.totalorder %s124, %s125
      %p137 = scmp.eq.s32.totalorder %s26, 1
      %p138 = por %p136, %p137
      %p140 = scmp.ne.s32.totalorder %s125, %s139
      %p141 = scmp.eq.s32.totalorder %s26, 0
      %p142 = por %p140, %p141
      %s144 = sadd.s32 %s143, 1
      %p147 = scmp.eq.s32.totalorder %s20, 1
      %p148 = scmp.ne.s32.totalorder %s143, %s145
      %p149 = scmp.eq.s32.totalorder %s20, 0
      %p150 = por %p148, %p149
      %p151 = scmp.ne.s32.totalorder %s143, %s145
      %p152 = scmp.eq.s32.totalorder %s25, 1
      %p153 = por %p151, %p152
      %p154 = scmp.ne.s32.totalorder %s145, %s146
      %p155 = scmp.eq.s32.totalorder %s25, 0
      %p156 = por %p154, %p155
      %p157 = scmp.ne.s32.totalorder %s145, %s146
      %p158 = scmp.eq.s32.totalorder %s26, 1
      %p159 = por %p157, %p158
      %p161 = scmp.ne.s32.totalorder %s146, %s160
      %p162 = scmp.eq.s32.totalorder %s26, 0
      %p163 = por %p161, %p162
      %s164 = ssub.s32 %s27, %s39
      %p165 = scmp.eq.s32.totalorder %s164, 0
      %s167 = sadd.s32 %s166, 1
      %s168 = scalar_select %p165, %s166, %s167
      %p171 = pneg %p165
      %p172 = scmp.eq.s32.totalorder %s20, 1
      %p173 = por %p171, %p172
      %p174 = scmp.ne.s32.totalorder %s166, %s169
      %p175 = scmp.eq.s32.totalorder %s20, 0
      %p176 = por %p174, %p175
      %p177 = scmp.ne.s32.totalorder %s166, %s169
      %p178 = scmp.eq.s32.totalorder %s25, 1
      %p179 = por %p177, %p178
      %p180 = scmp.ne.s32.totalorder %s169, %s170
      %p181 = scmp.eq.s32.totalorder %s25, 0
      %p182 = por %p180, %p181
      %p183 = scmp.ne.s32.totalorder %s169, %s170
      %p184 = scmp.eq.s32.totalorder %s26, 1
      %p185 = por %p183, %p184
      %p187 = scmp.ne.s32.totalorder %s170, %s186
      %p188 = scmp.eq.s32.totalorder %s26, 0
      %p189 = por %p187, %p188
      %s190 = ssub.s32 %s27, %s39
      %p191 = scmp.eq.s32.totalorder %s190, 0
      %s193 = sadd.s32 %s192, 1
      %s194 = scalar_select %p191, %s192, %s193
      %p197 = pneg %p191
      %p198 = scmp.eq.s32.totalorder %s20, 1
      %p199 = por %p197, %p198
      %p200 = scmp.ne.s32.totalorder %s192, %s195
      %p201 = scmp.eq.s32.totalorder %s20, 0
      %p202 = por %p200, %p201
      %p203 = scmp.ne.s32.totalorder %s192, %s195
      %p204 = scmp.eq.s32.totalorder %s25, 1
      %p205 = por %p203, %p204
      %p206 = scmp.ne.s32.totalorder %s195, %s196
      %p207 = scmp.eq.s32.totalorder %s25, 0
      %p208 = por %p206, %p207
      %p209 = scmp.ne.s32.totalorder %s195, %s196
      %p210 = scmp.eq.s32.totalorder %s26, 1
      %p211 = por %p209, %p210
      %p213 = scmp.ne.s32.totalorder %s196, %s212
      %p214 = scmp.eq.s32.totalorder %s26, 0
      %p215 = por %p213, %p214
      %p216 = scmp.le.s32.totalorder 1, %s20
      %p217 = scmp.lt.s32.totalorder %s20, 3
      %p218 = pnand %p216, %p217
      %p219 = pneg %p218
      // Predicated region
      $region9: #{tpu_custom_call.1} parent=5 // pred_check
        _
      $region10: #{tpu_custom_call.1} parent=5 // pred_check_branch
        %221 = sbr.rel (%p218) target = $region12
      $region11: #{tpu_custom_call.1} parent=5 // pred_region
        %s222 = ssub.s32 %s20, 1
        // Predicated region
        $region13: #{tpu_custom_call.1} parent=11 // pred_check
          %p223 = pneg %p135
        $region14: #{tpu_custom_call.1} parent=11 // pred_check_branch
          %225 = sbr.rel (%p223) target = $region16
        $region15: #{tpu_custom_call.1} parent=11 // pred_region
          %227 = vsyncadd [#allocation4], 0
          %s228 = sshll.u32 %s3, 4
          %s229 = int_to_ptr.hbm [resolvable:$true] %s228
          %s230 = sshll.u32 [#allocation3], 4
          %s231 = int_to_ptr.vmem [resolvable:$true] %s230
          %236 = dma.hbm_to_vmem [thread:$0]  %s229, 512, %s231, [#allocation4], 128, 128, 8
        $region16: #{tpu_custom_call.1} parent=11 // pred_fallthru
          _
        // Predicated region
        $region17: #{tpu_custom_call.1} parent=11 // pred_check
          %p237 = pneg %p156
        $region18: #{tpu_custom_call.1} parent=11 // pred_check_branch
          %239 = sbr.rel (%p237) target = $region20
        $region19: #{tpu_custom_call.1} parent=11 // pred_region
          _
        $region20: #{tpu_custom_call.1} parent=11 // pred_fallthru
          _
      $region12: #{tpu_custom_call.1} parent=5 // pred_fallthru
        _
      %p240 = scmp.lt.s32.totalorder %s20, 2
      // Predicated region
      $region21: #{tpu_custom_call.1} parent=5 // pred_check
        %p241 = pneg %p240
      $region22: #{tpu_custom_call.1} parent=5 // pred_check_branch
        %243 = sbr.rel (%p241) target = $region24
      $region23: #{tpu_custom_call.1} parent=5 // pred_region
        // Predicated region
        $region25: #{tpu_custom_call.1} parent=23 // pred_check
          %p244 = pneg %p54
        $region26: #{tpu_custom_call.1} parent=23 // pred_check_branch
          %246 = sbr.rel (%p244) target = $region28
        $region27: #{tpu_custom_call.1} parent=23 // pred_region
          %p247 = scmp.lt.s32.totalorder %s27, 1
          %s248 = scalar_select %p247, %s27, 1
          %p249 = scmp.lt.s32.totalorder %s28, 0
          %s250 = scalar_select %p249, %s28, 0
          %s251 = sadd.s32 %s250, %s248
          %s252 = smul.addr %s251, 4
          %s253 = scalar_lea.vmem %s0, %s252
        $region28: #{tpu_custom_call.1} parent=23 // pred_fallthru
          _
        // Predicated region
        $region29: #{tpu_custom_call.1} parent=23 // pred_check
          %p254 = pneg %p82
        $region30: #{tpu_custom_call.1} parent=23 // pred_check_branch
          %256 = sbr.rel (%p254) target = $region32
        $region31: #{tpu_custom_call.1} parent=23 // pred_region
          %p257 = scmp.lt.s32.totalorder %s27, 1
          %s258 = scalar_select %p257, %s27, 1
          %p259 = scmp.lt.s32.totalorder %s28, 0
          %s260 = scalar_select %p259, %s28, 0
          %s261 = sadd.s32 %s260, %s258
          %s262 = smul.addr %s261, 4
          %s263 = scalar_lea.vmem %s1, %s262
        $region32: #{tpu_custom_call.1} parent=23 // pred_fallthru
          _
        // Predicated region
        $region33: #{tpu_custom_call.1} parent=23 // pred_check
          %p264 = pneg %p108
        $region34: #{tpu_custom_call.1} parent=23 // pred_check_branch
          %266 = sbr.rel (%p264) target = $region36
        $region35: #{tpu_custom_call.1} parent=23 // pred_region
          %p267 = scmp.lt.s32.totalorder %s27, 1
          %s268 = scalar_select %p267, %s27, 1
          %s269 = scalar_lea.vmem %s2, %s268
        $region36: #{tpu_custom_call.1} parent=23 // pred_fallthru
          _
      $region24: #{tpu_custom_call.1} parent=5 // pred_fallthru
        _
      %p270 = scmp.le.s32.totalorder 1, %s20
      %p271 = scmp.lt.s32.totalorder %s20, 3
      %p272 = pnand %p270, %p271
      %p273 = pneg %p272
      // Predicated region
      $region37: #{tpu_custom_call.1} parent=5 // pred_check
        _
      $region38: #{tpu_custom_call.1} parent=5 // pred_check_branch
        %275 = sbr.rel (%p272) target = $region40
      $region39: #{tpu_custom_call.1} parent=5 // pred_region
        %s276 = ssub.s32 %s20, 1
        // Predicated region
        $region41: #{tpu_custom_call.1} parent=39 // pred_check
          %p277 = pneg %p135
        $region42: #{tpu_custom_call.1} parent=39 // pred_check_branch
          %279 = sbr.rel (%p277) target = $region44
        $region43: #{tpu_custom_call.1} parent=39 // pred_region
          %281 = dma.done [#allocation4], 512
        $region44: #{tpu_custom_call.1} parent=39 // pred_fallthru
          _
        %p282 = scmp.lt.s32.totalorder %s29, 1
        %s283 = scalar_select %p282, %s29, 1
        %p284 = scmp.lt.s32.totalorder %s30, 0
        %s285 = scalar_select %p284, %s30, 0
        %s286 = sadd.s32 %s285, %s283
        %s287 = smul.addr %s286, 4
        %s288 = scalar_lea.vmem %s0, %s287
        %p289 = pneg %p60
        %p290 = pneg %p57
        %p291 = scmp.lt.s32.totalorder %s29, 1
        %s292 = scalar_select %p291, %s29, 1
        %p293 = scmp.lt.s32.totalorder %s30, 0
        %s294 = scalar_select %p293, %s30, 0
        %s295 = sadd.s32 %s294, %s292
        %s296 = smul.addr %s295, 4
        %s297 = scalar_lea.vmem %s1, %s296
        %p298 = pneg %p88
        %p299 = pneg %p85
        %p300 = scmp.lt.s32.totalorder %s29, 1
        %s301 = scalar_select %p300, %s29, 1
        %s302 = scalar_lea.vmem %s2, %s301
        %p303 = pneg %p114
        %p304 = pneg %p111
        %p305 = pneg %p135
        %p306 = pneg %p132
        %p307 = pneg %p156
        %p308 = pneg %p153
        %p309 = pneg %p182
        %p310 = pneg %p179
        %s311 = sand.u32 %s169, 1
        %s312 = scalar_lea.sflag [#allocation5], %s311
        %s313 = sand.u32 %s169, 1
        %s314 = scalar_lea.vmem [#allocation6], %s313
        %p315 = pneg %p208
        %p316 = pneg %p205
        %s317 = sand.u32 %s195, 1
        %s318 = scalar_lea.sflag [#allocation8], %s317
        %s319 = sand.u32 %s195, 1
        %s320 = scalar_lea.vmem [#allocation7], %s319
        %p321 = scmp.lt.s32.totalorder %s29, 1
        %s322 = scalar_select %p321, %s29, 1
        %p323 = scmp.lt.s32.totalorder %s30, 0
        %s324 = scalar_select %p323, %s30, 0
        %s325 = sadd.s32 %s324, %s322
        %s326 = smul.addr %s325, 4
        %s327 = scalar_lea.vmem %s0, %s326
        %p328 = scmp.lt.s32.totalorder %s29, 1
        %s329 = scalar_select %p328, %s29, 1
        %p330 = scmp.lt.s32.totalorder %s30, 0
        %s331 = scalar_select %p330, %s30, 0
        %s332 = sadd.s32 %s331, %s329
        %s333 = smul.addr %s332, 4
        %s334 = scalar_lea.vmem %s1, %s333
        %p335 = scmp.lt.s32.totalorder %s29, 1
        %s336 = scalar_select %p335, %s29, 1
        %s337 = scalar_lea.vmem %s2, %s336
        %p338 = scmp.eq.s32.totalorder %s30, 0
        // Predicated region
        $region45: #{tpu_custom_call.1} parent=39 // pred_check
          %p339 = pneg %p338
        $region46: #{tpu_custom_call.1} parent=39 // pred_check_branch
          %341 = sbr.rel (%p339) target = $region48
        $region47: #{tpu_custom_call.1} parent=39 // pred_region
          %vm342 = vcmask 253952
          %343 = vst.msk [vmem:[#allocation2] sm:$0x1] %vm342, 0.0
        $region48: #{tpu_custom_call.1} parent=39 // pred_fallthru
          _
        %v344 = vld [vmem:[%s327] sm:$0xf]
        %v345 = vld [vmem:[%s334] sm:$0xf]
        %347 = vset.pattern.permute.xlu0 0
        %348 = vperm.xlu0 %347, %v345
        %v349 = vpop.permute.xlu0 %348
        %v352 = vunpack.c.l.s4 839922192
        %v353 = vunpack.c.0.s8 %v352
        %v354 = vperm.slane %v349, %v353
        %v355 = vunpack.c.l.bf16 %v344
        %v356 = vunpack.c.l.bf16 %v354
        %v357 = vmul.f32 %v355, %v356
        %v358 = vpack.c.bf16 %v357, %v357
        %v359 = vunpack.c.l.bf16 %v358
        %v360 = vld [vmem:[#allocation2] sm:$0x1]
        %vm361 = vcmask 261120
        %v362 = vsel %vm361, %v359, 0.0
        %v363 = vrot.slane %v362, 4
        %v364 = vadd.f32 %v362, %v363
        %v365 = vrot.slane %v364, 2
        %v366 = vadd.f32 %v364, %v365
        %v367 = vrot.slane %v366, 1
        %v368 = vadd.f32 %v366, %v367
        %v369 = vadd.f32 %v360, %v368
        %vm370 = vcmask 253952
        %371 = vst.msk [vmem:[#allocation2] sm:$0x1] %vm370, %v369
        // Predicated region
        $region49: #{tpu_custom_call.1} parent=39 // pred_check
          %p372 = pneg %p338
        $region50: #{tpu_custom_call.1} parent=39 // pred_check_branch
          %374 = sbr.rel (%p372) target = $region52
        $region51: #{tpu_custom_call.1} parent=39 // pred_region
          %v375 = vld [vmem:[%s337] sm:$0x1]
          %v376 = vld [vmem:[#allocation2] sm:$0x1]
          %378 = vset.pattern.permute.xlu0 0
          %379 = vperm.xlu0 %378, %v375
          %v380 = vpop.permute.xlu0 %379
          %v382 = vperm.slane %v380, 0
          %v383 = vmul.f32 %v376, %v382
          %v384 = vld [vmem:[#allocation3] sm:$0xff]
          %v385 = vld [vmem:[#allocation3 + $0x8] sm:$0xff]
          %v386 = vld [vmem:[#allocation3 + $0x10] sm:$0xff]
          %v387 = vld [vmem:[#allocation3 + $0x18] sm:$0xff]
          %v388 = vld [vmem:[%s4] sm:$0x1]
          %v390 = vsel %vm361, %v383, 0
          %392 = vmatpush.msra.mxu0 0.0
          %393 = vmatpush.msra.mxu0 0.0
          %394 = vmatpush.msra.mxu0 0.0
          %395 = vmatpush.msra.mxu0 0.0
          %396 = vmatpush.msra.mxu0 0.0
          %397 = vmatpush.msra.mxu0 0.0
          %398 = vmatpush.msra.mxu0 0.0
          %399 = vmatpush.msra.mxu0 0.0
          %400 = vmatpush.msra.mxu0 0.0
          %401 = vmatpush.msra.mxu0 0.0
          %402 = vmatpush.msra.mxu0 0.0
          %403 = vmatpush.msra.mxu0 0.0
          %404 = vmatpush.msra.mxu0 %v387
          %405 = vmatpush.msra.mxu0 %v386
          %406 = vmatpush.msra.mxu0 %v385
          %407 = vmatpush.msra.mxu0 %v384
          %408 = vmatmul.f32.gmra.mxu0 %v390
          %v409 = vpop.f32.mrf.mxu0
          %v410 = vadd.f32 %v388, %v409
          %411 = vdwg.mxu0
          %412 = vst [vmem:[%s314] sm:$0x1] %v410
          %vm413 = vcmask 1040384
          %v414 = vsel %vm413, %v410, -inf
          %415 = vmax.xlane.f32.xlu0 %v414
          %v416 = vpop.xlane.xlu0 %415
          %v417 = vsub.f32 %v410, %v416
          %v418 = vmul.f32 %v417, 1.442695
          %v419 = vpow.pop %v418
          %v420 = vsel %vm413, %v419, 0.0
          %421 = vadd.xlane.f32.xlu0 %v420
          %v422 = vpop.xlane.xlu0 %421
          %v423 = vrcp.pop %v422
          %v424 = vmul.f32 %v422, %v423
          %v425 = vsub.f32 1.0, %v424
          %v426 = vmul.f32 %v423, %v425
          %v427 = vadd.f32 %v423, %v426
          %vm428 = vweird.f32 %v422
          %vm429 = vweird.f32 %v423
          %vm430 = vmor %vm428, %vm429
          %v431 = vsel %vm430, %v423, %v427
          %v432 = vand.u32 2147483647, %v422
          %vm433 = vcmp.eq.f32.partialorder %v432, 8.507059e+37
          %v434 = vand.u32 %v422, 2147483648
          %v435 = vor.u32 1.1754944e-38, %v434
          %v436 = vsel %vm433, %v435, %v431
          %v437 = vmul.f32 %v419, %v436
          %438 = vst [vmem:[%s320] sm:$0x1] %v437
        $region52: #{tpu_custom_call.1} parent=39 // pred_fallthru
          _
        %s439 = sand.u32 %s169, 1
        %s440 = scalar_lea.sflag [#allocation5], %s439
        %s441 = sand.u32 %s169, 1
        %s442 = scalar_lea.vmem [#allocation6], %s441
        %s443 = sand.u32 %s195, 1
        %s444 = scalar_lea.sflag [#allocation8], %s443
        %s445 = sand.u32 %s195, 1
        %s446 = scalar_lea.vmem [#allocation7], %s445
        // Predicated region
        $region53: #{tpu_custom_call.1} parent=39 // pred_check
          %p447 = pneg %p179
        $region54: #{tpu_custom_call.1} parent=39 // pred_check_branch
          %449 = sbr.rel (%p447) target = $region56
        $region55: #{tpu_custom_call.1} parent=39 // pred_region
          %451 = vsyncadd %s440, 0
          %s452 = scalar_lea.hbm %s5, %s29
          %s454 = sshll.u32 %s442, 4
          %s455 = int_to_ptr.vmem [resolvable:$true] %s454
          %s456 = sshll.u32 %s452, 4
          %s457 = int_to_ptr.hbm [resolvable:$true] %s456
          %459 = dma.vmem_to_hbm [thread:$0]  %s455, 16, %s457, %s440
        $region56: #{tpu_custom_call.1} parent=39 // pred_fallthru
          _
        // Predicated region
        $region57: #{tpu_custom_call.1} parent=39 // pred_check
          %p460 = pneg %p205
        $region58: #{tpu_custom_call.1} parent=39 // pred_check_branch
          %462 = sbr.rel (%p460) target = $region60
        $region59: #{tpu_custom_call.1} parent=39 // pred_region
          %464 = vsyncadd %s444, 0
          %s465 = scalar_lea.hbm %s6, %s29
          %s467 = sshll.u32 %s446, 4
          %s468 = int_to_ptr.vmem [resolvable:$true] %s467
          %s469 = sshll.u32 %s465, 4
          %s470 = int_to_ptr.hbm [resolvable:$true] %s469
          %472 = dma.vmem_to_hbm [thread:$0]  %s468, 16, %s470, %s444
        $region60: #{tpu_custom_call.1} parent=39 // pred_fallthru
          _
      $region40: #{tpu_custom_call.1} parent=5 // pred_fallthru
        _
      %p473 = scmp.le.s32.totalorder 2, %s20
      // Predicated region
      $region61: #{tpu_custom_call.1} parent=5 // pred_check
        %p474 = pneg %p473
      $region62: #{tpu_custom_call.1} parent=5 // pred_check_branch
        %476 = sbr.rel (%p474) target = $region64
      $region63: #{tpu_custom_call.1} parent=5 // pred_region
        %s477 = ssub.s32 %s20, 2
        // Predicated region
        $region65: #{tpu_custom_call.1} parent=63 // pred_check
          %p478 = pneg %p185
        $region66: #{tpu_custom_call.1} parent=63 // pred_check_branch
          %480 = sbr.rel (%p478) target = $region68
        $region67: #{tpu_custom_call.1} parent=63 // pred_region
          %s481 = sand.u32 %s170, 1
          %s482 = scalar_lea.sflag [#allocation5], %s481
          %s483 = sand.u32 %s170, 1
          %s484 = scalar_lea.vmem [#allocation6], %s483
          %486 = dma.done %s482, 16
        $region68: #{tpu_custom_call.1} parent=63 // pred_fallthru
          _
        // Predicated region
        $region69: #{tpu_custom_call.1} parent=63 // pred_check
          %p487 = pneg %p211
        $region70: #{tpu_custom_call.1} parent=63 // pred_check_branch
          %489 = sbr.rel (%p487) target = $region72
        $region71: #{tpu_custom_call.1} parent=63 // pred_region
          %s490 = sand.u32 %s196, 1
          %s491 = scalar_lea.sflag [#allocation8], %s490
          %s492 = sand.u32 %s196, 1
          %s493 = scalar_lea.vmem [#allocation7], %s492
          %495 = dma.done %s491, 16
        $region72: #{tpu_custom_call.1} parent=63 // pred_fallthru
          _
      $region64: #{tpu_custom_call.1} parent=5 // pred_fallthru
        _
    $region6: #{tpu_custom_call.1} parent=1 // loop_footer
      %s24 = sadd.s32 1, %s20
    $region7: #{tpu_custom_call.1} parent=1 // loop_footer_branch
      %19 = sbr.rel target = $region3
    $region8: #{tpu_custom_call.1} parent=1 // loop_exit
      _
    %496 = vsyncpa [#allocation4], 1
    %s497 = scalar_lea.sflag [#allocation4], 1
    %498 = vsyncpa %s497, 1
    %499 = vsyncpa [#allocation5], 1
    %s500 = scalar_lea.sflag [#allocation5], 1
    %501 = vsyncpa %s500, 1
    %502 = vsyncpa [#allocation8], 1
    %s503 = scalar_lea.sflag [#allocation8], 1
    %504 = vsyncpa %s503, 1

</llo_original>
